<compile_context>
chip_gen: v7x
topology: tpu7x:2x2x1
jax: 0.10.0
libtpu: 0.0.40
codegen_flags: <defaults>
</compile_context>

<pallas_src>
import functools

import jax
import jax.numpy as jnp
import numpy as np
from jax import lax
from jax.experimental import pallas as pl
from jax.experimental.pallas import tpu as pltpu


def _round_up(x, m):
    return (x + m - 1) // m * m


# ----------------------------------------------------------------------------
# Fused kernel: ConvReLU(3x3, pad 1) + ConvTranspose2d(4, s=2, p=1) + ReLU for
# one batch element.  Flat layout: q = y*(W+2) + x on lanes, channels on
# sublanes.  The 2 extra columns per row are junk; they double as the column
# halo for stage 2 (masked to zero) and are dropped by the wrapper.
# ----------------------------------------------------------------------------
def decoder_block_kernel(mask_ref, xf_ref, w1_ref, b1_ref, w2_ref, b2_ref,
                         o_ref, f2_ref, *, H, W, P0, R0):
    # mask_ref: (1, HWp)           f32   1.0 on real columns, 0.0 on junk columns
    # xf_ref  : (1, Cin_p, L1)     f32   flat zero-padded input image (lane-dense)
    # w1_ref  : (Cmid_p, 9*Cin_p)  bf16  folded 3x3 taps, K block t = ky*3+kx
    # b1_ref  : (Cmid_p, 1)        f32
    # w2_ref  : (4*Cout, 9*Cmid_p) bf16  folded sub-pixel deconv taps
    # b2_ref  : (4*Cout, 1)        f32
    # o_ref   : (1, 4*Cout, HWp)   f32   lane-dense output, rows = (ry, rx, cout)
    # f2_ref  : (Cmid_p, L2)       f32   scratch: zero-bordered flat y1
    Wp = W + 2
    HWp = H * Wp
    cmid_p, L2 = f2_ref.shape

    mask = mask_ref[...]                                        # (1, HWp)

    # -------- stage 1: 3x3 conv (pad=1) + bias + ReLU, one dot (K=9*Cin_p) ---
    # 9 shifted views of the flat padded image (static lane-offset loads),
    # concatenated along sublanes (8-aligned blocks), cast to bf16 once.
    p1 = jnp.concatenate(
        [xf_ref[0, :, pl.ds(ky * Wp + kx, HWp)]
         for ky in range(3) for kx in range(3)], axis=0)        # (9*Cin_p, HWp) f32
    acc1 = jnp.dot(w1_ref[...], p1.astype(jnp.bfloat16),
                   preferred_element_type=jnp.float32)          # (Cmid_p, HWp) f32
    # ReLU + zero the junk columns (they are exactly stage-2's column halo).
    y1 = jnp.maximum(acc1 + b1_ref[...], 0.0) * mask            # (Cmid_p, HWp) f32

    # -------- stage 2: ConvTranspose2d(k=4, s=2, p=1) + ReLU, sub-pixel ------
    # Zero only the two lane-aligned border tiles, then overwrite the interior
    # (no full-scratch sweep; halo stays zero, interior fully rewritten).
    f2_ref[:, pl.ds(0, P0)] = jnp.zeros((cmid_p, P0), jnp.float32)
    f2_ref[:, pl.ds(R0, L2 - R0)] = jnp.zeros((cmid_p, L2 - R0), jnp.float32)
    f2_ref[:, pl.ds(P0, HWp)] = y1

    base = P0 - (Wp + 1)                                        # offset of y1pad[0,0]
    p2 = jnp.concatenate(
        [f2_ref[:, pl.ds(base + oy * Wp + ox, HWp)]
         for oy in range(3) for ox in range(3)], axis=0)        # (9*Cmid_p, HWp) f32
    acc2 = jnp.dot(w2_ref[...], p2.astype(jnp.bfloat16),
                   preferred_element_type=jnp.float32)          # (4*Cout, HWp) f32

    o_ref[0] = jnp.maximum(acc2 + b2_ref[...], 0.0).astype(o_ref.dtype)


# ----------------------------------------------------------------------------
# Weight preparation (plain JAX, runs once under jit; tiny tensors).
# ----------------------------------------------------------------------------
def _subpixel_deconv_weights(Wt):
    """(Cmid, Cout, 4, 4) -> (9, Cmid, 4*Cout) sub-pixel deconv weights.

    Window offset t = oy*3 + ox into y1 padded by 1; column = (ry*2+rx)*Cout+co.
    Phase (ry, rx) uses offsets with 0 <= oy-ry <= 1, 0 <= ox-rx <= 1 and the
    original transposed-conv tap (ky, kx) = (3+ry-2*oy, 3+rx-2*ox).
    """
    Cmid, Cout = Wt.shape[0], Wt.shape[1]
    w = jnp.zeros((9, Cmid, 4, Cout), Wt.dtype)
    for oy in range(3):
        for ox in range(3):
            for ry in range(2):
                for rx in range(2):
                    if 0 <= oy - ry <= 1 and 0 <= ox - rx <= 1:
                        ky = 3 + ry - 2 * oy
                        kx = 3 + rx - 2 * ox
                        w = w.at[oy * 3 + ox, :, ry * 2 + rx, :].set(Wt[:, :, ky, kx])
    return w.reshape(9, Cmid, 4 * Cout)


def init_decoder_block_params(key, in_channels, middle_channels, out_channels):
    k1, k2, k3, k4 = jax.random.split(key, 4)
    W1 = jax.random.normal(k1, (middle_channels, in_channels, 3, 3), jnp.float32) * 0.1
    b1 = jax.random.normal(k2, (middle_channels,), jnp.float32) * 0.1
    Wt = jax.random.normal(k3, (middle_channels, out_channels, 4, 4), jnp.float32) * 0.1
    b2 = jax.random.normal(k4, (out_channels,), jnp.float32) * 0.1
    return W1, b1, Wt, b2


# ----------------------------------------------------------------------------
# Forward wrapper (PyTorch-compatible NCHW interface).
# ----------------------------------------------------------------------------
@jax.jit
def decoder_block_forward(x_nchw, params):
    """x_nchw: (N, Cin, H, W) -> (N, Cout, 2H, 2W), matching DecoderBlock(is_deconv=True)."""
    W1, b1, Wt, b2 = params
    N, Cin, H, W = x_nchw.shape
    Cmid = W1.shape[0]
    Cout = Wt.shape[1]

    Wp = W + 2
    HWp = H * Wp
    Cin_p = _round_up(Cin, 8)                 # sublane-aligned channel blocks
    Cmid_p = _round_up(Cmid, 8)
    L1 = HWp + 2 * Wp + 2                     # flat padded input (+2 spare zeros)
    P0 = _round_up(Wp + 1, 128)               # lane-aligned interior start in scratch
    R0 = (P0 + HWp) // 128 * 128              # lane-aligned start of right halo zeroing
    L2 = _round_up(P0 + HWp + Wp + 1, 128)    # scratch length

    # Lane-dense flat padded input: (N, Cin_p, L1) f32.
    xpad = jnp.pad(x_nchw.astype(jnp.float32),
                   ((0, 0), (0, Cin_p - Cin), (1, 1), (1, 1)))      # (N, Cin_p, H+2, W+2)
    xflat = jnp.pad(xpad.reshape(N, Cin_p, (H + 2) * Wp),
                    ((0, 0), (0, 0), (0, L1 - (H + 2) * Wp)))

    # Folded stage-1 weights: (Cmid_p, 9*Cin_p), K block t = ky*3+kx.
    w1 = jnp.zeros((Cmid_p, 9, Cin_p), jnp.float32)
    w1 = w1.at[:Cmid, :, :Cin].set(
        jnp.transpose(W1, (0, 2, 3, 1)).reshape(Cmid, 9, Cin))
    w1 = w1.reshape(Cmid_p, 9 * Cin_p).astype(jnp.bfloat16)
    b1v = jnp.zeros((Cmid_p, 1), jnp.float32).at[:Cmid, 0].set(b1)

    # Folded stage-2 weights: (4*Cout, 9*Cmid_p), rows ordered (ry, rx, cout).
    w2sub = _subpixel_deconv_weights(Wt)                             # (9, Cmid, 4*Cout)
    w2 = jnp.zeros((9, Cmid_p, 4 * Cout), jnp.float32).at[:, :Cmid, :].set(w2sub)
    w2 = jnp.transpose(w2, (2, 0, 1)).reshape(4 * Cout, 9 * Cmid_p).astype(jnp.bfloat16)
    b2v = jnp.tile(b2, 4).reshape(4 * Cout, 1).astype(jnp.float32)

    # Valid-column mask over the flat (W+2)-wide rows.
    mask = jnp.tile(
        jnp.concatenate([jnp.ones((W,), jnp.float32), jnp.zeros((2,), jnp.float32)]),
        H).reshape(1, HWp)

    kernel = functools.partial(decoder_block_kernel, H=H, W=W, P0=P0, R0=R0)

    out = pl.pallas_call(
        kernel,
        out_shape=jax.ShapeDtypeStruct((N, 4 * Cout, HWp), jnp.float32),
        grid=(N,),
        in_specs=[
            pl.BlockSpec((1, HWp), lambda n: (0, 0)),                 # mask
            pl.BlockSpec((1, Cin_p, L1), lambda n: (n, 0, 0)),        # flat padded x
            pl.BlockSpec((Cmid_p, 9 * Cin_p), lambda n: (0, 0)),      # w1
            pl.BlockSpec((Cmid_p, 1), lambda n: (0, 0)),              # b1
            pl.BlockSpec((4 * Cout, 9 * Cmid_p), lambda n: (0, 0)),   # w2
            pl.BlockSpec((4 * Cout, 1), lambda n: (0, 0)),            # b2
        ],
        out_specs=pl.BlockSpec((1, 4 * Cout, HWp), lambda n: (n, 0, 0)),
        scratch_shapes=[pltpu.VMEM((Cmid_p, L2), jnp.float32)],
        compiler_params=pltpu.CompilerParams(
            dimension_semantics=("parallel",)),
    )(mask, xflat, w1, b1v, w2, b2v)

    # Drop the 2 junk columns per row and interleave the 4 sub-pixel phases:
    # (N, [ry, rx, co], [y, x]) -> NCHW (2H, 2W).
    out = out.reshape(N, 2, 2, Cout, H, Wp)[..., :W]     # (N, ry, rx, Cout, H, W)
    out = jnp.transpose(out, (0, 3, 4, 1, 5, 2))         # (N, Cout, H, ry, W, rx)
    return out.reshape(N, Cout, 2 * H, 2 * W)


# ----------------------------------------------------------------------------
# Pure-JAX reference (lax convolutions) for correctness checking.
# ----------------------------------------------------------------------------
def decoder_block_reference(x_nchw, params):
    W1, b1, Wt, b2 = params
    x = jnp.transpose(x_nchw, (0, 2, 3, 1)).astype(jnp.float32)
    dn = ("NHWC", "HWIO", "NHWC")
    w1_hwio = jnp.transpose(W1, (2, 3, 1, 0))
    y1 = lax.conv_general_dilated(x, w1_hwio, (1, 1), ((1, 1), (1, 1)),
                                  dimension_numbers=dn)
    y1 = jnp.maximum(y1 + b1[None, None, None, :], 0.0)
    Wflip = Wt[:, :, ::-1, ::-1]
    wt_hwio = jnp.transpose(Wflip, (2, 3, 0, 1))
    y2 = lax.conv_general_dilated(y1, wt_hwio, (1, 1), ((2, 2), (2, 2)),
                                  lhs_dilation=(2, 2), dimension_numbers=dn)
    y2 = jnp.maximum(y2 + b2[None, None, None, :], 0.0)
    return jnp.transpose(y2, (0, 3, 1, 2))


if __name__ == "__main__":
    key = jax.random.PRNGKey(0)
    kx, kp = jax.random.split(key)

    N, Cin, Cmid, Cout, H, W = 2, 4, 8, 4, 16, 16
    x = jax.random.normal(kx, (N, Cin, H, W), jnp.float32)
    params = init_decoder_block_params(kp, Cin, Cmid, Cout)

    out = jax.block_until_ready(decoder_block_forward(x, params))
    ref = jax.block_until_ready(decoder_block_reference(x, params))

    assert out.shape == (N, Cout, 2 * H, 2 * W), out.shape
    # bf16 MXU operands (f32 accumulation) -> slightly looser tolerance vs f32 ref.
    np.testing.assert_allclose(np.asarray(out), np.asarray(ref), rtol=2e-2, atol=2e-2)

    print("KERNEL_OK")
</pallas_src>

<mosaic_0001>
module attributes {stable_mosaic.version = 11 : i64} {
  func.func @decoder_block_kernel(%arg0: i32, %arg1: memref<1x288xf32, #tpu.memory_space<vmem>>, %arg2: memref<1x8x326xf32, #tpu.memory_space<vmem>>, %arg3: memref<8x72xbf16, #tpu.memory_space<vmem>>, %arg4: memref<8x1xf32, #tpu.memory_space<vmem>>, %arg5: memref<16x72xbf16, #tpu.memory_space<vmem>>, %arg6: memref<16x1xf32, #tpu.memory_space<vmem>>, %arg7: memref<1x16x288xf32, #tpu.memory_space<vmem>>, %arg8: memref<8x512xf32, #tpu.memory_space<vmem>>) attributes {dimension_semantics = [#tpu.dimension_semantics<parallel>], iteration_bounds = array<i64: 2>, scalar_prefetch = 0 : i64, scratch_operands = 1 : i64, tpu.core_type = #tpu.core_type<tc>, window_params = [{pipeline_mode = #tpu.pipeline_mode<synchronous>, transform_indices = @transform_0, window_bounds = array<i64: 1, 288>}, {transform_indices = @transform_1, window_bounds = array<i64: 1, 8, 326>}, {pipeline_mode = #tpu.pipeline_mode<synchronous>, transform_indices = @transform_2, window_bounds = array<i64: 8, 72>}, {pipeline_mode = #tpu.pipeline_mode<synchronous>, transform_indices = @transform_3, window_bounds = array<i64: 8, 1>}, {pipeline_mode = #tpu.pipeline_mode<synchronous>, transform_indices = @transform_4, window_bounds = array<i64: 16, 72>}, {pipeline_mode = #tpu.pipeline_mode<synchronous>, transform_indices = @transform_5, window_bounds = array<i64: 16, 1>}, {transform_indices = @transform_6, window_bounds = array<i64: 1, 16, 288>}]} {
    %c0 = arith.constant 0 : index
    %c0_0 = arith.constant 0 : index
    %0 = vector.load %arg1[%c0, %c0_0] : memref<1x288xf32, #tpu.memory_space<vmem>>, vector<1x288xf32>
    %c0_1 = arith.constant 0 : index
    %c0_2 = arith.constant 0 : index
    %c0_3 = arith.constant 0 : index
    %1 = vector.load %arg2[%c0_1, %c0_2, %c0_3] : memref<1x8x326xf32, #tpu.memory_space<vmem>>, vector<1x8x288xf32>
    %2 = vector.shape_cast %1 : vector<1x8x288xf32> to vector<8x288xf32>
    %c0_4 = arith.constant 0 : index
    %c0_5 = arith.constant 0 : index
    %c1 = arith.constant 1 : index
    %3 = vector.load %arg2[%c0_4, %c0_5, %c1] : memref<1x8x326xf32, #tpu.memory_space<vmem>>, vector<1x8x288xf32>
    %4 = vector.shape_cast %3 : vector<1x8x288xf32> to vector<8x288xf32>
    %c0_6 = arith.constant 0 : index
    %c0_7 = arith.constant 0 : index
    %c2 = arith.constant 2 : index
    %5 = vector.load %arg2[%c0_6, %c0_7, %c2] : memref<1x8x326xf32, #tpu.memory_space<vmem>>, vector<1x8x288xf32>
    %6 = vector.shape_cast %5 : vector<1x8x288xf32> to vector<8x288xf32>
    %c0_8 = arith.constant 0 : index
    %c0_9 = arith.constant 0 : index
    %c18 = arith.constant 18 : index
    %7 = vector.load %arg2[%c0_8, %c0_9, %c18] : memref<1x8x326xf32, #tpu.memory_space<vmem>>, vector<1x8x288xf32>
    %8 = vector.shape_cast %7 : vector<1x8x288xf32> to vector<8x288xf32>
    %c0_10 = arith.constant 0 : index
    %c0_11 = arith.constant 0 : index
    %c19 = arith.constant 19 : index
    %9 = vector.load %arg2[%c0_10, %c0_11, %c19] : memref<1x8x326xf32, #tpu.memory_space<vmem>>, vector<1x8x288xf32>
    %10 = vector.shape_cast %9 : vector<1x8x288xf32> to vector<8x288xf32>
    %c0_12 = arith.constant 0 : index
    %c0_13 = arith.constant 0 : index
    %c20 = arith.constant 20 : index
    %11 = vector.load %arg2[%c0_12, %c0_13, %c20] : memref<1x8x326xf32, #tpu.memory_space<vmem>>, vector<1x8x288xf32>
    %12 = vector.shape_cast %11 : vector<1x8x288xf32> to vector<8x288xf32>
    %c0_14 = arith.constant 0 : index
    %c0_15 = arith.constant 0 : index
    %c36 = arith.constant 36 : index
    %13 = vector.load %arg2[%c0_14, %c0_15, %c36] : memref<1x8x326xf32, #tpu.memory_space<vmem>>, vector<1x8x288xf32>
    %14 = vector.shape_cast %13 : vector<1x8x288xf32> to vector<8x288xf32>
    %c0_16 = arith.constant 0 : index
    %c0_17 = arith.constant 0 : index
    %c37 = arith.constant 37 : index
    %15 = vector.load %arg2[%c0_16, %c0_17, %c37] : memref<1x8x326xf32, #tpu.memory_space<vmem>>, vector<1x8x288xf32>
    %16 = vector.shape_cast %15 : vector<1x8x288xf32> to vector<8x288xf32>
    %c0_18 = arith.constant 0 : index
    %c0_19 = arith.constant 0 : index
    %c38 = arith.constant 38 : index
    %17 = vector.load %arg2[%c0_18, %c0_19, %c38] : memref<1x8x326xf32, #tpu.memory_space<vmem>>, vector<1x8x288xf32>
    %18 = vector.shape_cast %17 : vector<1x8x288xf32> to vector<8x288xf32>
    %19 = tpu.concatenate %2, %4, %6, %8, %10, %12, %14, %16, %18 in 0 : vector<8x288xf32>, vector<8x288xf32>, vector<8x288xf32>, vector<8x288xf32>, vector<8x288xf32>, vector<8x288xf32>, vector<8x288xf32>, vector<8x288xf32>, vector<8x288xf32> -> vector<72x288xf32>
    %c0_20 = arith.constant 0 : index
    %c0_21 = arith.constant 0 : index
    %20 = vector.load %arg3[%c0_20, %c0_21] : memref<8x72xbf16, #tpu.memory_space<vmem>>, vector<8x72xbf16>
    %21 = arith.truncf %19 : vector<72x288xf32> to vector<72x288xbf16>
    %cst = arith.constant dense<0.000000e+00> : vector<8x288xf32>
    %22 = tpu.matmul %20, %21, %cst {dimension_numbers = #tpu.dot_dimension_numbers<[1], [0], [0], [1], [0, 0, 1, 1], [], []>} : vector<8x72xbf16>, vector<72x288xbf16>, vector<8x288xf32> -> vector<8x288xf32>
    %c0_22 = arith.constant 0 : index
    %c0_23 = arith.constant 0 : index
    %23 = vector.load %arg4[%c0_22, %c0_23] : memref<8x1xf32, #tpu.memory_space<vmem>>, vector<8x1xf32>
    %24 = vector.broadcast %23 : vector<8x1xf32> to vector<8x288xf32>
    %25 = arith.addf %22, %24 : vector<8x288xf32>
    %cst_24 = arith.constant 0.000000e+00 : f32
    %26 = vector.broadcast %cst_24 : f32 to vector<8x288xf32>
    %27 = arith.maximumf %25, %26 : vector<8x288xf32>
    %28 = vector.broadcast %0 : vector<1x288xf32> to vector<8x288xf32>
    %29 = arith.mulf %27, %28 : vector<8x288xf32>
    %cst_25 = arith.constant 0.000000e+00 : f32
    %30 = vector.broadcast %cst_25 : f32 to vector<8x128xf32>
    %c0_26 = arith.constant 0 : index
    %c0_27 = arith.constant 0 : index
    %31 = vector.load %arg8[%c0_26, %c0_27] : memref<8x512xf32, #tpu.memory_space<vmem>>, vector<8x128xf32>
    tpu.vector_store %arg8[%c0_26, %c0_27], %30 {strides = array<i32>} : memref<8x512xf32, #tpu.memory_space<vmem>>, vector<8x128xf32>,
    %cst_28 = arith.constant 0.000000e+00 : f32
    %32 = vector.broadcast %cst_28 : f32 to vector<8x128xf32>
    %c0_29 = arith.constant 0 : index
    %c384 = arith.constant 384 : index
    %33 = vector.load %arg8[%c0_29, %c384] : memref<8x512xf32, #tpu.memory_space<vmem>>, vector<8x128xf32>
    tpu.vector_store %arg8[%c0_29, %c384], %32 {strides = array<i32>} : memref<8x512xf32, #tpu.memory_space<vmem>>, vector<8x128xf32>,
    %c0_30 = arith.constant 0 : index
    %c128 = arith.constant 128 : index
    %34 = vector.load %arg8[%c0_30, %c128] : memref<8x512xf32, #tpu.memory_space<vmem>>, vector<8x288xf32>
    tpu.vector_store %arg8[%c0_30, %c128], %29 {strides = array<i32>} : memref<8x512xf32, #tpu.memory_space<vmem>>, vector<8x288xf32>,
    %c0_31 = arith.constant 0 : index
    %c109 = arith.constant 109 : index
    %35 = vector.load %arg8[%c0_31, %c109] : memref<8x512xf32, #tpu.memory_space<vmem>>, vector<8x288xf32>
    %c0_32 = arith.constant 0 : index
    %c110 = arith.constant 110 : index
    %36 = vector.load %arg8[%c0_32, %c110] : memref<8x512xf32, #tpu.memory_space<vmem>>, vector<8x288xf32>
    %c0_33 = arith.constant 0 : index
    %c111 = arith.constant 111 : index
    %37 = vector.load %arg8[%c0_33, %c111] : memref<8x512xf32, #tpu.memory_space<vmem>>, vector<8x288xf32>
    %c0_34 = arith.constant 0 : index
    %c127 = arith.constant 127 : index
    %38 = vector.load %arg8[%c0_34, %c127] : memref<8x512xf32, #tpu.memory_space<vmem>>, vector<8x288xf32>
    %c0_35 = arith.constant 0 : index
    %c128_36 = arith.constant 128 : index
    %39 = vector.load %arg8[%c0_35, %c128_36] : memref<8x512xf32, #tpu.memory_space<vmem>>, vector<8x288xf32>
    %c0_37 = arith.constant 0 : index
    %c129 = arith.constant 129 : index
    %40 = vector.load %arg8[%c0_37, %c129] : memref<8x512xf32, #tpu.memory_space<vmem>>, vector<8x288xf32>
    %c0_38 = arith.constant 0 : index
    %c145 = arith.constant 145 : index
    %41 = vector.load %arg8[%c0_38, %c145] : memref<8x512xf32, #tpu.memory_space<vmem>>, vector<8x288xf32>
    %c0_39 = arith.constant 0 : index
    %c146 = arith.constant 146 : index
    %42 = vector.load %arg8[%c0_39, %c146] : memref<8x512xf32, #tpu.memory_space<vmem>>, vector<8x288xf32>
    %c0_40 = arith.constant 0 : index
    %c147 = arith.constant 147 : index
    %43 = vector.load %arg8[%c0_40, %c147] : memref<8x512xf32, #tpu.memory_space<vmem>>, vector<8x288xf32>
    %44 = tpu.concatenate %35, %36, %37, %38, %39, %40, %41, %42, %43 in 0 : vector<8x288xf32>, vector<8x288xf32>, vector<8x288xf32>, vector<8x288xf32>, vector<8x288xf32>, vector<8x288xf32>, vector<8x288xf32>, vector<8x288xf32>, vector<8x288xf32> -> vector<72x288xf32>
    %c0_41 = arith.constant 0 : index
    %c0_42 = arith.constant 0 : index
    %45 = vector.load %arg5[%c0_41, %c0_42] : memref<16x72xbf16, #tpu.memory_space<vmem>>, vector<16x72xbf16>
    %46 = arith.truncf %44 : vector<72x288xf32> to vector<72x288xbf16>
    %cst_43 = arith.constant dense<0.000000e+00> : vector<16x288xf32>
    %47 = tpu.matmul %45, %46, %cst_43 {dimension_numbers = #tpu.dot_dimension_numbers<[1], [0], [0], [1], [0, 0, 1, 1], [], []>} : vector<16x72xbf16>, vector<72x288xbf16>, vector<16x288xf32> -> vector<16x288xf32>
    %c0_44 = arith.constant 0 : index
    %c0_45 = arith.constant 0 : index
    %48 = vector.load %arg6[%c0_44, %c0_45] : memref<16x1xf32, #tpu.memory_space<vmem>>, vector<16x1xf32>
    %49 = vector.broadcast %48 : vector<16x1xf32> to vector<16x288xf32>
    %50 = arith.addf %47, %49 : vector<16x288xf32>
    %cst_46 = arith.constant 0.000000e+00 : f32
    %51 = vector.broadcast %cst_46 : f32 to vector<16x288xf32>
    %52 = arith.maximumf %50, %51 : vector<16x288xf32>
    %c0_47 = arith.constant 0 : index
    %c0_48 = arith.constant 0 : index
    %c0_49 = arith.constant 0 : index
    %53 = vector.load %arg7[%c0_47, %c0_48, %c0_49] : memref<1x16x288xf32, #tpu.memory_space<vmem>>, vector<1x16x288xf32>
    %54 = vector.shape_cast %53 : vector<1x16x288xf32> to vector<16x288xf32>
    %55 = vector.shape_cast %52 : vector<16x288xf32> to vector<1x16x288xf32>
    tpu.vector_store %arg7[%c0_47, %c0_48, %c0_49], %55 {strides = array<i32>} : memref<1x16x288xf32, #tpu.memory_space<vmem>>, vector<1x16x288xf32>,
    return
  }
  func.func @transform_0(%arg0: i32) -> (i32, i32) {
    %c0_i32 = arith.constant 0 : i32
    %c0_i32_0 = arith.constant 0 : i32
    %c0_i32_1 = arith.constant 0 : i32
    return %c0_i32, %c0_i32_0 : i32, i32
  }
  func.func @transform_1(%arg0: i32) -> (i32, i32, i32) {
    %c0_i32 = arith.constant 0 : i32
    %c0_i32_0 = arith.constant 0 : i32
    %c0_i32_1 = arith.constant 0 : i32
    return %arg0, %c0_i32, %c0_i32_0 : i32, i32, i32
  }
  func.func @transform_2(%arg0: i32) -> (i32, i32) {
    %c0_i32 = arith.constant 0 : i32
    %c0_i32_0 = arith.constant 0 : i32
    %c0_i32_1 = arith.constant 0 : i32
    return %c0_i32, %c0_i32_0 : i32, i32
  }
  func.func @transform_3(%arg0: i32) -> (i32, i32) {
    %c0_i32 = arith.constant 0 : i32
    %c0_i32_0 = arith.constant 0 : i32
    %c0_i32_1 = arith.constant 0 : i32
    return %c0_i32, %c0_i32_0 : i32, i32
  }
  func.func @transform_4(%arg0: i32) -> (i32, i32) {
    %c0_i32 = arith.constant 0 : i32
    %c0_i32_0 = arith.constant 0 : i32
    %c0_i32_1 = arith.constant 0 : i32
    return %c0_i32, %c0_i32_0 : i32, i32
  }
  func.func @transform_5(%arg0: i32) -> (i32, i32) {
    %c0_i32 = arith.constant 0 : i32
    %c0_i32_0 = arith.constant 0 : i32
    %c0_i32_1 = arith.constant 0 : i32
    return %c0_i32, %c0_i32_0 : i32, i32
  }
  func.func @transform_6(%arg0: i32) -> (i32, i32, i32) {
    %c0_i32 = arith.constant 0 : i32
    %c0_i32_0 = arith.constant 0 : i32
    %c0_i32_1 = arith.constant 0 : i32
    return %arg0, %c0_i32, %c0_i32_0 : i32, i32, i32
  }
}

</mosaic_0001>

<llo_original>
// kernel: tile.12
$region0: #{tile.12}
  #allocation0 [shape = 's32[1]{0}', space=sflag, size = 0x4, scoped, tag = 'scoped memory for tile.12']
  %s0 = inlined_call_operand.vmem [shape: f32[4], index: 0, kind: input, shape index: {}]
  %s1 = inlined_call_operand.vmem [shape: f32[4,4], index: 1, kind: output, shape index: {}]
  // Predicated region
  $region2: #{tile.12} parent=0 // pred_check
    _
  $region3: #{tile.12} parent=0 // pred_check_branch
    %3 = sbr.rel (0) target = $region5
  $region4: #{tile.12} parent=0 // pred_region
    _
  $region5: #{tile.12} parent=0 // pred_fallthru
    _
  %v4 = vld [vmem:[%s0] ss:$0 sm:$0xff]
  %5 = vst [vmem:[%s1] sm:$0xf] %v4

// kernel: tile.16
$region0: #{tile.16}
  #allocation0 [shape = 's32[1]{0}', space=sflag, size = 0x4, scoped, tag = 'scoped memory for tile.16']
  %s0 = inlined_call_operand.vmem [shape: f32[18], index: 0, kind: input, shape index: {}]
  %s1 = inlined_call_operand.vmem [shape: f32[16,18], index: 1, kind: output, shape index: {}]
  // Predicated region
  $region2: #{tile.16} parent=0 // pred_check
    _
  $region3: #{tile.16} parent=0 // pred_check_branch
    %3 = sbr.rel (0) target = $region5
  $region4: #{tile.16} parent=0 // pred_region
    _
  $region5: #{tile.16} parent=0 // pred_fallthru
    _
  %v4 = vld [vmem:[%s0] ss:$0 sm:$0xff]
  %5 = vst [vmem:[%s1] sm:$0xff] %v4
  %s6 = scalar_lea.vmem %s1, 8
  %7 = vst [vmem:[%s6] sm:$0xff] %v4

// kernel: tile.0
$region0: #{tile.0}
  %s0 = inlined_call_operand.vmem [shape: f32[4,4], index: 0, kind: input, shape index: {}]
  %s1 = inlined_call_operand.vmem [shape: f32[16,1], index: 1, kind: output, shape index: {}]
  $region1: #{tile.0} parent=0
    #allocation0 [shape = 'u8[4096]{0}', space=vmem, size = 0x1000, scoped, tag = 'scoped mem for input reshape']
    %s3 = sshllo.u32 0, 4
    %v4 = vld [vmem:[%s0] sm:%s3]
    %5 = vst [vmem:[#allocation0] sm:%s3] %v4
    %v6 = vld [vmem:[#allocation0] sm:$0xf]
    %vm7 = vcmask 7168
    %8 = vst.msk [vmem:[%s1] ss:$4 sm:$0xf] %vm7, %v6
    %v9 = vld [vmem:[#allocation0] sm:$0xf]
    %10 = vrot.lane.b32.xlu0 %v9, 127
    %v11 = vpop.permute.xlu0 %10
    %vm12 = vcmask 7168
    %s13 = scalar_lea.vmem %s1, 1
    %14 = vst.msk [vmem:[%s13] ss:$4 sm:$0xf] %vm12, %v11
    %v15 = vld [vmem:[#allocation0] sm:$0xf]
    %16 = vrot.lane.b32.xlu0 %v15, 126
    %v17 = vpop.permute.xlu0 %16
    %vm18 = vcmask 7168
    %s19 = scalar_lea.vmem %s1, 2
    %20 = vst.msk [vmem:[%s19] ss:$4 sm:$0xf] %vm18, %v17
    %v21 = vld [vmem:[#allocation0] sm:$0xf]
    %22 = vrot.lane.b32.xlu0 %v21, 125
    %v23 = vpop.permute.xlu0 %22
    %vm24 = vcmask 7168
    %s25 = scalar_lea.vmem %s1, 3
    %26 = vst.msk [vmem:[%s25] ss:$4 sm:$0xf] %vm24, %v23

// kernel: tile.17
$region0: #{tile.17}
  %s0 = inlined_call_operand.vmem [shape: f32[16,18], index: 0, kind: input, shape index: {}]
  %s1 = inlined_call_operand.vmem [shape: f32[1,288], index: 1, kind: output, shape index: {}]
  $region1: #{tile.17} parent=0
    #allocation0 [shape = 'u8[12288]{0}', space=vmem, size = 0x3000, scoped, tag = 'scoped mem for output reshape']
    %v2 = vld [vmem:[%s0] sm:$0x1]
    %vm3 = vcmask 146432
    %4 = vst.msk [vmem:[#allocation0] sm:$0x1] %vm3, %v2
    %s5 = scalar_lea.vmem %s0, 7
    %v6 = vld [vmem:[%s5] sm:$0x1]
    %s7 = scalar_lea.vmem %s0, 7
    %v8 = vld [vmem:[%s7] sm:$0x1]
    %vm9 = vcmask 15360
    %v10 = vsel %vm9, %v8, %v6
    %11 = vrot.lane.b32.xlu0 %v10, 126
    %v12 = vpop.permute.xlu0 %11
    %vm13 = vcmask 130048
    %s14 = scalar_lea.vmem [#allocation0], 8
    %15 = vst.msk [vmem:[%s14] sm:$0x1] %vm13, %v12
    %vm16 = vcmask 1048560
    %17 = vst.msk [vmem:[#allocation0] sm:$0x1] %vm16, %v12
    %s18 = scalar_lea.vmem %s0, 14
    %v19 = vld [vmem:[%s18] sm:$0x1]
    %s20 = scalar_lea.vmem %s0, 14
    %v21 = vld [vmem:[%s20] sm:$0x1]
    %vm22 = vcmask 31744
    %v23 = vsel %vm22, %v21, %v19
    %24 = vrot.lane.b32.xlu0 %v23, 124
    %v25 = vpop.permute.xlu0 %24
    %vm26 = vcmask 113664
    %s27 = scalar_lea.vmem [#allocation0], 16
    %28 = vst.msk [vmem:[%s27] sm:$0x1] %vm26, %v25
    %vm29 = vcmask 1048544
    %s30 = scalar_lea.vmem [#allocation0], 8
    %31 = vst.msk [vmem:[%s30] sm:$0x1] %vm29, %v25
    %s32 = scalar_lea.vmem %s0, 6
    %v33 = vld [vmem:[%s32] sm:$0x1]
    %34 = vrot.lane.b32.xlu0 %v33, 108
    %v35 = vpop.permute.xlu0 %34
    %vm36 = vcmask 1032032
    %37 = vst.msk [vmem:[#allocation0] sm:$0x1] %vm36, %v35
    %s38 = scalar_lea.vmem %s0, 13
    %v39 = vld [vmem:[%s38] sm:$0x1]
    %40 = vrot.lane.b32.xlu0 %v39, 106
    %v41 = vpop.permute.xlu0 %40
    %vm42 = vcmask 1015632
    %s43 = scalar_lea.vmem [#allocation0], 8
    %44 = vst.msk [vmem:[%s43] sm:$0x1] %vm42, %v41
    %s45 = scalar_lea.vmem %s0, 5
    %v46 = vld [vmem:[%s45] sm:$0x1]
    %47 = vrot.lane.b32.xlu0 %v46, 90
    %v48 = vpop.permute.xlu0 %47
    %vm49 = vcmask 884432
    %50 = vst.msk [vmem:[#allocation0] sm:$0x1] %vm49, %v48
    %s51 = scalar_lea.vmem %s0, 12
    %v52 = vld [vmem:[%s51] sm:$0x1]
    %53 = vrot.lane.b32.xlu0 %v52, 88
    %v54 = vpop.permute.xlu0 %53
    %vm55 = vcmask 868032
    %s56 = scalar_lea.vmem [#allocation0], 8
    %57 = vst.msk [vmem:[%s56] sm:$0x1] %vm55, %v54
    %s58 = scalar_lea.vmem %s0, 4
    %v59 = vld [vmem:[%s58] sm:$0x1]
    %60 = vrot.lane.b32.xlu0 %v59, 72
    %v61 = vpop.permute.xlu0 %60
    %vm62 = vcmask 736832
    %63 = vst.msk [vmem:[#allocation0] sm:$0x1] %vm62, %v61
    %s64 = scalar_lea.vmem %s0, 11
    %v65 = vld [vmem:[%s64] sm:$0x1]
    %66 = vrot.lane.b32.xlu0 %v65, 70
    %v67 = vpop.permute.xlu0 %66
    %vm68 = vcmask 720432
    %s69 = scalar_lea.vmem [#allocation0], 8
    %70 = vst.msk [vmem:[%s69] sm:$0x1] %vm68, %v67
    %s71 = scalar_lea.vmem %s0, 3
    %v72 = vld [vmem:[%s71] sm:$0x1]
    %73 = vrot.lane.b32.xlu0 %v72, 54
    %v74 = vpop.permute.xlu0 %73
    %vm75 = vcmask 589232
    %76 = vst.msk [vmem:[#allocation0] sm:$0x1] %vm75, %v74
    %s77 = scalar_lea.vmem %s0, 10
    %v78 = vld [vmem:[%s77] sm:$0x1]
    %79 = vrot.lane.b32.xlu0 %v78, 52
    %v80 = vpop.permute.xlu0 %79
    %vm81 = vcmask 572832
    %s82 = scalar_lea.vmem [#allocation0], 8
    %83 = vst.msk [vmem:[%s82] sm:$0x1] %vm81, %v80
    %s84 = scalar_lea.vmem %s0, 2
    %v85 = vld [vmem:[%s84] sm:$0x1]
    %86 = vrot.lane.b32.xlu0 %v85, 36
    %v87 = vpop.permute.xlu0 %86
    %vm88 = vcmask 441632
    %89 = vst.msk [vmem:[#allocation0] sm:$0x1] %vm88, %v87
    %s90 = scalar_lea.vmem %s0, 9
    %v91 = vld [vmem:[%s90] sm:$0x1]
    %92 = vrot.lane.b32.xlu0 %v91, 34
    %v93 = vpop.permute.xlu0 %92
    %vm94 = vcmask 425232
    %s95 = scalar_lea.vmem [#allocation0], 8
    %96 = vst.msk [vmem:[%s95] sm:$0x1] %vm94, %v93
    %s97 = scalar_lea.vmem %s0, 1
    %v98 = vld [vmem:[%s97] sm:$0x1]
    %99 = vrot.lane.b32.xlu0 %v98, 18
    %v100 = vpop.permute.xlu0 %99
    %vm101 = vcmask 294032
    %102 = vst.msk [vmem:[#allocation0] sm:$0x1] %vm101, %v100
    %s103 = scalar_lea.vmem %s0, 8
    %v104 = vld [vmem:[%s103] sm:$0x1]
    %105 = vrot.lane.b32.xlu0 %v104, 16
    %v106 = vpop.permute.xlu0 %105
    %vm107 = vcmask 277632
    %s108 = scalar_lea.vmem [#allocation0], 8
    %109 = vst.msk [vmem:[%s108] sm:$0x1] %vm107, %v106
    %s110 = scalar_lea.vmem %s0, 15
    %v111 = vld [vmem:[%s110] sm:$0x1]
    %112 = vrot.lane.b32.xlu0 %v111, 14
    %v113 = vpop.permute.xlu0 %112
    %vm114 = vcmask 261232
    %s115 = scalar_lea.vmem [#allocation0], 16
    %116 = vst.msk [vmem:[%s115] sm:$0x1] %vm114, %v113
    %s118 = sshllo.u32 0, 1
    %v120 = vld [vmem:[#allocation0] sm:%s118]
    %s121 = sshllo.u32 0, 1
    %122 = vst [vmem:[%s1] sm:%s121] %v120
    %s123 = scalar_lea.vmem [#allocation0], 8
    %v124 = vld [vmem:[%s123] sm:%s118]
    %s125 = sshllo.u32 0, 1
    %s126 = scalar_lea.vmem %s1, 1
    %127 = vst [vmem:[%s126] sm:%s125] %v124
    %s128 = scalar_lea.vmem [#allocation0], 16
    %v129 = vld [vmem:[%s128] sm:%s118]
    %s130 = sshllo.u32 0, 1
    %s131 = smul.addr 1, 2
    %s132 = scalar_lea.vmem %s1, %s131
    %133 = vst [vmem:[%s132] sm:%s130] %v129

// kernel: decoder_block_forward.1
$region0: #{decoder_block_forward.1}
  #allocation0 [shape = 'u32[]', space=smem, size = 0x4, offset = 0x4, fixed_abs, tag = 'smem constant byte address 0x4 - core index']
  #allocation1 [shape = 'u32[144,128]{1,0:T(1,128)}', space=vmem, size = 0x12000, scoped, tag = 'internal scratch']
  #allocation2 [shape = 'f32[8,512]{1,0:T(8,128)}', space=vmem, size = 0x4000, scoped, tag = 'scratch operand']
  %s0 = inlined_call_operand.vmem [shape: f32[1,288], index: 0, kind: input, shape index: {}]
  %s1 = inlined_call_operand.vmem [shape: f32[2,8,326], index: 1, kind: input, shape index: {}]
  %s2 = inlined_call_operand.vmem [shape: bf16[8,72], index: 2, kind: input, shape index: {}]
  %s3 = inlined_call_operand.vmem [shape: f32[8,1], index: 3, kind: input, shape index: {}]
  %s4 = inlined_call_operand.vmem [shape: bf16[16,72], index: 4, kind: input, shape index: {}]
  %s5 = inlined_call_operand.vmem [shape: f32[16,1], index: 5, kind: input, shape index: {}]
  %s6 = inlined_call_operand.vmem [shape: f32[2,16,288], index: 6, kind: output, shape index: {}]
  %s7 = sld [smem:[#allocation0]]
  $region57: #{decoder_block_forward.1} parent=0
    _
  %s9 = ssub.s32 1, %s7
  %s10 = scalar_select 0, %s9, %s7
  loop: start=0, step=1, limit=4
  $region2: #{decoder_block_forward.1} parent=0 // loop_pre_header
    _
  $region3: #{decoder_block_forward.1} parent=0 // loop_header
    %s12 = sphi 0, %s16
    %p13 = scmp.ge.s32.totalorder %s12, 4
    %s20 = sphi 0, %s20
    %s22 = sphi 0, %s20
    %s23 = sphi 0, %s22
    %s37 = sphi 0, %s23
    %s43 = sphi 0, %s45
    %s46 = sphi 0, %s43
    %s47 = sphi 0, %s46
    %s63 = sphi 0, %s47
    %s67 = sphi 0, %s67
    %s69 = sphi 0, %s67
    %s70 = sphi 0, %s69
    %s84 = sphi 0, %s70
    %s88 = sphi 0, %s88
    %s90 = sphi 0, %s88
    %s91 = sphi 0, %s90
    %s105 = sphi 0, %s91
    %s109 = sphi 0, %s109
    %s111 = sphi 0, %s109
    %s112 = sphi 0, %s111
    %s126 = sphi 0, %s112
    %s130 = sphi 0, %s130
    %s132 = sphi 0, %s130
    %s133 = sphi 0, %s132
    %s147 = sphi 0, %s133
    %s153 = sphi 0, %s155
    %s156 = sphi 0, %s153
    %s157 = sphi 0, %s156
    %s173 = sphi 0, %s157
  $region4: #{decoder_block_forward.1} parent=0 // loop_header_branch
    %15 = sbr.rel (%p13) target = $region8
  $region5: #{decoder_block_forward.1} parent=0 // loop_body
    %s17 = ssub.s32 %s12, 1
    %s18 = ssub.s32 %s12, 2
    %s19 = sadd.s32 %s12, 1
    %s21 = sadd.s32 %s20, 1
    %p24 = scmp.eq.s32.totalorder %s12, 1
    %p25 = scmp.ne.s32.totalorder %s20, %s22
    %p26 = scmp.eq.s32.totalorder %s12, 0
    %p27 = por %p25, %p26
    %p28 = scmp.ne.s32.totalorder %s20, %s22
    %p29 = scmp.eq.s32.totalorder %s17, 1
    %p30 = por %p28, %p29
    %p31 = scmp.ne.s32.totalorder %s22, %s23
    %p32 = scmp.eq.s32.totalorder %s17, 0
    %p33 = por %p31, %p32
    %p34 = scmp.ne.s32.totalorder %s22, %s23
    %p35 = scmp.eq.s32.totalorder %s18, 1
    %p36 = por %p34, %p35
    %p38 = scmp.ne.s32.totalorder %s23, %s37
    %p39 = scmp.eq.s32.totalorder %s18, 0
    %p40 = por %p38, %p39
    %s41 = ssub.s32 %s12, %s19
    %p42 = scmp.eq.s32.totalorder %s41, 0
    %s44 = sadd.s32 %s43, 1
    %s45 = scalar_select %p42, %s43, %s44
    %p48 = pneg %p42
    %p49 = scmp.eq.s32.totalorder %s12, 1
    %p50 = por %p48, %p49
    %p51 = scmp.ne.s32.totalorder %s43, %s46
    %p52 = scmp.eq.s32.totalorder %s12, 0
    %p53 = por %p51, %p52
    %p54 = scmp.ne.s32.totalorder %s43, %s46
    %p55 = scmp.eq.s32.totalorder %s17, 1
    %p56 = por %p54, %p55
    %p57 = scmp.ne.s32.totalorder %s46, %s47
    %p58 = scmp.eq.s32.totalorder %s17, 0
    %p59 = por %p57, %p58
    %p60 = scmp.ne.s32.totalorder %s46, %s47
    %p61 = scmp.eq.s32.totalorder %s18, 1
    %p62 = por %p60, %p61
    %p64 = scmp.ne.s32.totalorder %s47, %s63
    %p65 = scmp.eq.s32.totalorder %s18, 0
    %p66 = por %p64, %p65
    %s68 = sadd.s32 %s67, 1
    %p71 = scmp.eq.s32.totalorder %s12, 1
    %p72 = scmp.ne.s32.totalorder %s67, %s69
    %p73 = scmp.eq.s32.totalorder %s12, 0
    %p74 = por %p72, %p73
    %p75 = scmp.ne.s32.totalorder %s67, %s69
    %p76 = scmp.eq.s32.totalorder %s17, 1
    %p77 = por %p75, %p76
    %p78 = scmp.ne.s32.totalorder %s69, %s70
    %p79 = scmp.eq.s32.totalorder %s17, 0
    %p80 = por %p78, %p79
    %p81 = scmp.ne.s32.totalorder %s69, %s70
    %p82 = scmp.eq.s32.totalorder %s18, 1
    %p83 = por %p81, %p82
    %p85 = scmp.ne.s32.totalorder %s70, %s84
    %p86 = scmp.eq.s32.totalorder %s18, 0
    %p87 = por %p85, %p86
    %s89 = sadd.s32 %s88, 1
    %p92 = scmp.eq.s32.totalorder %s12, 1
    %p93 = scmp.ne.s32.totalorder %s88, %s90
    %p94 = scmp.eq.s32.totalorder %s12, 0
    %p95 = por %p93, %p94
    %p96 = scmp.ne.s32.totalorder %s88, %s90
    %p97 = scmp.eq.s32.totalorder %s17, 1
    %p98 = por %p96, %p97
    %p99 = scmp.ne.s32.totalorder %s90, %s91
    %p100 = scmp.eq.s32.totalorder %s17, 0
    %p101 = por %p99, %p100
    %p102 = scmp.ne.s32.totalorder %s90, %s91
    %p103 = scmp.eq.s32.totalorder %s18, 1
    %p104 = por %p102, %p103
    %p106 = scmp.ne.s32.totalorder %s91, %s105
    %p107 = scmp.eq.s32.totalorder %s18, 0
    %p108 = por %p106, %p107
    %s110 = sadd.s32 %s109, 1
    %p113 = scmp.eq.s32.totalorder %s12, 1
    %p114 = scmp.ne.s32.totalorder %s109, %s111
    %p115 = scmp.eq.s32.totalorder %s12, 0
    %p116 = por %p114, %p115
    %p117 = scmp.ne.s32.totalorder %s109, %s111
    %p118 = scmp.eq.s32.totalorder %s17, 1
    %p119 = por %p117, %p118
    %p120 = scmp.ne.s32.totalorder %s111, %s112
    %p121 = scmp.eq.s32.totalorder %s17, 0
    %p122 = por %p120, %p121
    %p123 = scmp.ne.s32.totalorder %s111, %s112
    %p124 = scmp.eq.s32.totalorder %s18, 1
    %p125 = por %p123, %p124
    %p127 = scmp.ne.s32.totalorder %s112, %s126
    %p128 = scmp.eq.s32.totalorder %s18, 0
    %p129 = por %p127, %p128
    %s131 = sadd.s32 %s130, 1
    %p134 = scmp.eq.s32.totalorder %s12, 1
    %p135 = scmp.ne.s32.totalorder %s130, %s132
    %p136 = scmp.eq.s32.totalorder %s12, 0
    %p137 = por %p135, %p136
    %p138 = scmp.ne.s32.totalorder %s130, %s132
    %p139 = scmp.eq.s32.totalorder %s17, 1
    %p140 = por %p138, %p139
    %p141 = scmp.ne.s32.totalorder %s132, %s133
    %p142 = scmp.eq.s32.totalorder %s17, 0
    %p143 = por %p141, %p142
    %p144 = scmp.ne.s32.totalorder %s132, %s133
    %p145 = scmp.eq.s32.totalorder %s18, 1
    %p146 = por %p144, %p145
    %p148 = scmp.ne.s32.totalorder %s133, %s147
    %p149 = scmp.eq.s32.totalorder %s18, 0
    %p150 = por %p148, %p149
    %s151 = ssub.s32 %s12, %s19
    %p152 = scmp.eq.s32.totalorder %s151, 0
    %s154 = sadd.s32 %s153, 1
    %s155 = scalar_select %p152, %s153, %s154
    %p158 = pneg %p152
    %p159 = scmp.eq.s32.totalorder %s12, 1
    %p160 = por %p158, %p159
    %p161 = scmp.ne.s32.totalorder %s153, %s156
    %p162 = scmp.eq.s32.totalorder %s12, 0
    %p163 = por %p161, %p162
    %p164 = scmp.ne.s32.totalorder %s153, %s156
    %p165 = scmp.eq.s32.totalorder %s17, 1
    %p166 = por %p164, %p165
    %p167 = scmp.ne.s32.totalorder %s156, %s157
    %p168 = scmp.eq.s32.totalorder %s17, 0
    %p169 = por %p167, %p168
    %p170 = scmp.ne.s32.totalorder %s156, %s157
    %p171 = scmp.eq.s32.totalorder %s18, 1
    %p172 = por %p170, %p171
    %p174 = scmp.ne.s32.totalorder %s157, %s173
    %p175 = scmp.eq.s32.totalorder %s18, 0
    %p176 = por %p174, %p175
    %p177 = scmp.le.s32.totalorder 1, %s12
    %p178 = scmp.lt.s32.totalorder %s12, 3
    %p179 = pnand %p177, %p178
    %p180 = pneg %p179
    // Predicated region
    $region9: #{decoder_block_forward.1} parent=5 // pred_check
      _
    $region10: #{decoder_block_forward.1} parent=5 // pred_check_branch
      %182 = sbr.rel (%p179) target = $region12
    $region11: #{decoder_block_forward.1} parent=5 // pred_region
      %s183 = ssub.s32 %s12, 1
      // Predicated region
      $region13: #{decoder_block_forward.1} parent=11 // pred_check
        %p184 = pneg %p33
      $region14: #{decoder_block_forward.1} parent=11 // pred_check_branch
        %186 = sbr.rel (%p184) target = $region16
      $region15: #{decoder_block_forward.1} parent=11 // pred_region
        _
      $region16: #{decoder_block_forward.1} parent=11 // pred_fallthru
        _
      // Predicated region
      $region17: #{decoder_block_forward.1} parent=11 // pred_check
        %p187 = pneg %p80
      $region18: #{decoder_block_forward.1} parent=11 // pred_check_branch
        %189 = sbr.rel (%p187) target = $region20
      $region19: #{decoder_block_forward.1} parent=11 // pred_region
        _
      $region20: #{decoder_block_forward.1} parent=11 // pred_fallthru
        _
      // Predicated region
      $region21: #{decoder_block_forward.1} parent=11 // pred_check
        %p190 = pneg %p101
      $region22: #{decoder_block_forward.1} parent=11 // pred_check_branch
        %192 = sbr.rel (%p190) target = $region24
      $region23: #{decoder_block_forward.1} parent=11 // pred_region
        _
      $region24: #{decoder_block_forward.1} parent=11 // pred_fallthru
        _
      // Predicated region
      $region25: #{decoder_block_forward.1} parent=11 // pred_check
        %p193 = pneg %p122
      $region26: #{decoder_block_forward.1} parent=11 // pred_check_branch
        %195 = sbr.rel (%p193) target = $region28
      $region27: #{decoder_block_forward.1} parent=11 // pred_region
        _
      $region28: #{decoder_block_forward.1} parent=11 // pred_fallthru
        _
      // Predicated region
      $region29: #{decoder_block_forward.1} parent=11 // pred_check
        %p196 = pneg %p143
      $region30: #{decoder_block_forward.1} parent=11 // pred_check_branch
        %198 = sbr.rel (%p196) target = $region32
      $region31: #{decoder_block_forward.1} parent=11 // pred_region
        _
      $region32: #{decoder_block_forward.1} parent=11 // pred_fallthru
        _
    $region12: #{decoder_block_forward.1} parent=5 // pred_fallthru
      _
    %p199 = scmp.lt.s32.totalorder %s12, 2
    // Predicated region
    $region33: #{decoder_block_forward.1} parent=5 // pred_check
      %p200 = pneg %p199
    $region34: #{decoder_block_forward.1} parent=5 // pred_check_branch
      %202 = sbr.rel (%p200) target = $region36
    $region35: #{decoder_block_forward.1} parent=5 // pred_region
      // Predicated region
      $region37: #{decoder_block_forward.1} parent=35 // pred_check
        %p203 = pneg %p53
      $region38: #{decoder_block_forward.1} parent=35 // pred_check_branch
        %205 = sbr.rel (%p203) target = $region40
      $region39: #{decoder_block_forward.1} parent=35 // pred_region
        %p206 = scmp.lt.s32.totalorder %s12, 1
        %s207 = scalar_select %p206, %s12, 1
        %s208 = smul.addr %s207, 3
        %s209 = smul.addr %s208, 8
        %s210 = scalar_lea.vmem %s1, %s209
      $region40: #{decoder_block_forward.1} parent=35 // pred_fallthru
        _
    $region36: #{decoder_block_forward.1} parent=5 // pred_fallthru
      _
    %p211 = scmp.le.s32.totalorder 1, %s12
    %p212 = scmp.lt.s32.totalorder %s12, 3
    %p213 = pnand %p211, %p212
    %p214 = pneg %p213
    // Predicated region
    $region41: #{decoder_block_forward.1} parent=5 // pred_check
      _
    $region42: #{decoder_block_forward.1} parent=5 // pred_check_branch
      %216 = sbr.rel (%p213) target = $region44
    $region43: #{decoder_block_forward.1} parent=5 // pred_region
      %s217 = ssub.s32 %s12, 1
      %p218 = pneg %p33
      %p219 = pneg %p30
      %p220 = scmp.lt.s32.totalorder %s17, 1
      %s221 = scalar_select %p220, %s17, 1
      %s222 = smul.addr %s221, 3
      %s223 = smul.addr %s222, 8
      %s224 = scalar_lea.vmem %s1, %s223
      %p225 = pneg %p59
      %p226 = pneg %p56
      %p227 = pneg %p80
      %p228 = pneg %p77
      %p229 = pneg %p101
      %p230 = pneg %p98
      %p231 = pneg %p122
      %p232 = pneg %p119
      %p233 = pneg %p143
      %p234 = pneg %p140
      %p235 = pneg %p169
      %p236 = pneg %p166
      %p237 = scmp.lt.s32.totalorder %s17, 1
      %s238 = scalar_select %p237, %s17, 1
      %s239 = smul.addr %s238, 6
      %s240 = smul.addr %s239, 8
      %s241 = scalar_lea.vmem %s6, %s240
      %p242 = scmp.lt.s32.totalorder %s17, 1
      %s243 = scalar_select %p242, %s17, 1
      %s244 = smul.addr %s243, 3
      %s245 = smul.addr %s244, 8
      %s246 = scalar_lea.vmem %s1, %s245
      %p247 = scmp.lt.s32.totalorder %s17, 1
      %s248 = scalar_select %p247, %s17, 1
      %s249 = smul.addr %s248, 6
      %s250 = smul.addr %s249, 8
      %s251 = scalar_lea.vmem %s6, %s250
      %v253 = vld [vmem:[%s0] sm:$0x7]
      %v254 = vld [vmem:[%s246] sm:$0xff]
      %v255 = vld [vmem:[%s246 + $0x8] sm:$0xff]
      %v256 = vld [vmem:[%s246 + $0x10] sm:$0xff]
      %260 = vrot.lane.b32.xlu0 %v254, 127
      %v261 = vpop.permute.xlu0 %260
      %262 = vrot.lane.b32.xlu0 %v255, 127
      %v263 = vpop.permute.xlu0 %262
      %264 = vrot.lane.b32.xlu0 %v256, 127
      %v265 = vpop.permute.xlu0 %264
      %vm266 = vcmask 1039360
      %v267 = vsel %vm266, %v261, %v263
      %v268 = vsel %vm266, %v263, %v265
      %272 = vrot.lane.b32.xlu0 %v254, 126
      %v273 = vpop.permute.xlu0 %272
      %274 = vrot.lane.b32.xlu0 %v255, 126
      %v275 = vpop.permute.xlu0 %274
      %276 = vrot.lane.b32.xlu0 %v256, 126
      %v277 = vpop.permute.xlu0 %276
      %vm278 = vcmask 1031168
      %v279 = vsel %vm278, %v273, %v275
      %v280 = vsel %vm278, %v275, %v277
      %284 = vrot.lane.b32.xlu0 %v254, 110
      %v285 = vpop.permute.xlu0 %284
      %286 = vrot.lane.b32.xlu0 %v255, 110
      %v287 = vpop.permute.xlu0 %286
      %288 = vrot.lane.b32.xlu0 %v256, 110
      %v289 = vpop.permute.xlu0 %288
      %vm290 = vcmask 900096
      %v291 = vsel %vm290, %v285, %v287
      %v292 = vsel %vm290, %v287, %v289
      %296 = vrot.lane.b32.xlu0 %v254, 109
      %v297 = vpop.permute.xlu0 %296
      %298 = vrot.lane.b32.xlu0 %v255, 109
      %v299 = vpop.permute.xlu0 %298
      %300 = vrot.lane.b32.xlu0 %v256, 109
      %v301 = vpop.permute.xlu0 %300
      %vm302 = vcmask 891904
      %v303 = vsel %vm302, %v297, %v299
      %v304 = vsel %vm302, %v299, %v301
      %308 = vrot.lane.b32.xlu0 %v254, 108
      %v309 = vpop.permute.xlu0 %308
      %310 = vrot.lane.b32.xlu0 %v255, 108
      %v311 = vpop.permute.xlu0 %310
      %312 = vrot.lane.b32.xlu0 %v256, 108
      %v313 = vpop.permute.xlu0 %312
      %vm314 = vcmask 883712
      %v315 = vsel %vm314, %v309, %v311
      %v316 = vsel %vm314, %v311, %v313
      %320 = vrot.lane.b32.xlu0 %v254, 92
      %v321 = vpop.permute.xlu0 %320
      %322 = vrot.lane.b32.xlu0 %v255, 92
      %v323 = vpop.permute.xlu0 %322
      %324 = vrot.lane.b32.xlu0 %v256, 92
      %v325 = vpop.permute.xlu0 %324
      %vm326 = vcmask 752640
      %v327 = vsel %vm326, %v321, %v323
      %v328 = vsel %vm326, %v323, %v325
      %332 = vrot.lane.b32.xlu0 %v254, 91
      %v333 = vpop.permute.xlu0 %332
      %334 = vrot.lane.b32.xlu0 %v255, 91
      %v335 = vpop.permute.xlu0 %334
      %336 = vrot.lane.b32.xlu0 %v256, 91
      %v337 = vpop.permute.xlu0 %336
      %vm338 = vcmask 744448
      %v339 = vsel %vm338, %v333, %v335
      %v340 = vsel %vm338, %v335, %v337
      %344 = vrot.lane.b32.xlu0 %v254, 90
      %v345 = vpop.permute.xlu0 %344
      %346 = vrot.lane.b32.xlu0 %v255, 90
      %v347 = vpop.permute.xlu0 %346
      %348 = vrot.lane.b32.xlu0 %v256, 90
      %v349 = vpop.permute.xlu0 %348
      %vm350 = vcmask 736256
      %v351 = vsel %vm350, %v345, %v347
      %v352 = vsel %vm350, %v347, %v349
      %v356 = vld [vmem:[%s2] sm:$0xf]
      %v357 = vpack.c.bf16 %v267, %v254
      %v358 = vpack.c.bf16 %v268, %v255
      %v359 = vpack.c.bf16 %v265, %v256
      %v360 = vpack.c.bf16 %v291, %v279
      %v361 = vpack.c.bf16 %v292, %v280
      %v362 = vpack.c.bf16 %v289, %v277
      %v363 = vpack.c.bf16 %v315, %v303
      %v364 = vpack.c.bf16 %v316, %v304
      %v365 = vpack.c.bf16 %v313, %v301
      %v366 = vpack.c.bf16 %v339, %v327
      %v367 = vpack.c.bf16 %v340, %v328
      %v368 = vpack.c.bf16 %v337, %v325
      %v369 = vpack.c.bf16 %v351, %v351
      %v370 = vpack.c.bf16 %v352, %v352
      %v371 = vpack.c.bf16 %v349, %v349
      %v372 = vld [vmem:[%s3] sm:$0xff]
      %374 = vset.pattern.permute.xlu0 0
      %375 = vperm.xlu0 %374, %v372
      %v376 = vpop.permute.xlu0 %375
      %vm378 = vcmask 588800
      %v380 = vsel %vm378, %v356, 0
      %vm382 = vcmask 1043456
      %v384 = vsel %vm382, %v369, 0
      %v387 = vsel %vm382, %v370, 0
      %v390 = vsel %vm382, %v371, 0
      %392 = vmatprep.subr.bf16.mxu0 %v358
      %393 = vmatpush1.bf16.msra.mxu0 %v357
      %394 = vmatprep.subr.bf16.mxu0 %v361
      %395 = vmatpush1.bf16.msra.mxu0 %v360
      %396 = vmatprep.subr.bf16.mxu0 %v364
      %397 = vmatpush1.bf16.msra.mxu0 %v363
      %398 = vmatprep.subr.bf16.mxu0 %v367
      %399 = vmatpush1.bf16.msra.mxu0 %v366
      %400 = vmatprep.subr.bf16.mxu0 %v387
      %401 = vmatpush1.bf16.msra.mxu0 %v384
      %402 = vmatprep.subr.bf16.mxu0 0
      %403 = vmatpush1.bf16.msra.mxu0 0
      %404 = vmatprep.subr.bf16.mxu0 0
      %405 = vmatpush1.bf16.msra.mxu0 0
      %406 = vmatprep.subr.bf16.mxu0 0
      %407 = vmatpush1.bf16.msra.mxu0 0
      %408 = vmatprep.subr.bf16.mxu0 0
      %409 = vmatpush1.bf16.msra.mxu0 0
      %410 = vmatprep.subr.bf16.mxu0 0
      %411 = vmatpush1.bf16.msra.mxu0 0
      %412 = vmatprep.subr.bf16.mxu0 0
      %413 = vmatpush1.bf16.msra.mxu0 0
      %414 = vmatprep.subr.bf16.mxu0 0
      %415 = vmatpush1.bf16.msra.mxu0 0
      %416 = vmatprep.subr.bf16.mxu0 0
      %417 = vmatpush1.bf16.msra.mxu0 0
      %418 = vmatprep.subr.bf16.mxu0 0
      %419 = vmatpush1.bf16.msra.mxu0 0
      %420 = vmatprep.subr.bf16.mxu0 0
      %421 = vmatpush1.bf16.msra.mxu0 0
      %422 = vmatprep.subr.bf16.mxu0 0
      %423 = vmatpush1.bf16.msra.mxu0 0
      %424 = vmatprep.mubr.bf16.mxu0 0
      %425 = vmatmul.mubr.bf16.gmra.mrb[0].mxu0 %v380
      %v426 = vpop.f32.mrb[0].mxu0
      %v427 = vadd.f32 %v376, %v426
      %v428 = vpop.f32.mrb[0].mxu0
      %v429 = vadd.f32 %v376, %v428
      %v430 = vpop.f32.mrb[0].mxu0
      %v431 = vpop.f32.mrb[0].mxu0
      %432 = vdwg.mxu0
      %433 = vmatprep.subr.bf16.mxu0 0
      %434 = vmatpush1.bf16.msra.mxu0 %v359
      %435 = vmatprep.subr.bf16.mxu0 0
      %436 = vmatpush1.bf16.msra.mxu0 %v362
      %437 = vmatprep.subr.bf16.mxu0 0
      %438 = vmatpush1.bf16.msra.mxu0 %v365
      %439 = vmatprep.subr.bf16.mxu0 0
      %440 = vmatpush1.bf16.msra.mxu0 %v368
      %441 = vmatprep.subr.bf16.mxu0 0
      %442 = vmatpush1.bf16.msra.mxu0 %v390
      %443 = vmatprep.subr.bf16.mxu0 0
      %444 = vmatpush1.bf16.msra.mxu0 0
      %445 = vmatprep.subr.bf16.mxu0 0
      %446 = vmatpush1.bf16.msra.mxu0 0
      %447 = vmatprep.subr.bf16.mxu0 0
      %448 = vmatpush1.bf16.msra.mxu0 0
      %449 = vmatprep.subr.bf16.mxu0 0
      %450 = vmatpush1.bf16.msra.mxu0 0
      %451 = vmatprep.subr.bf16.mxu0 0
      %452 = vmatpush1.bf16.msra.mxu0 0
      %453 = vmatprep.subr.bf16.mxu0 0
      %454 = vmatpush1.bf16.msra.mxu0 0
      %455 = vmatprep.subr.bf16.mxu0 0
      %456 = vmatpush1.bf16.msra.mxu0 0
      %457 = vmatprep.subr.bf16.mxu0 0
      %458 = vmatpush1.bf16.msra.mxu0 0
      %459 = vmatprep.subr.bf16.mxu0 0
      %460 = vmatpush1.bf16.msra.mxu0 0
      %461 = vmatprep.subr.bf16.mxu0 0
      %462 = vmatpush1.bf16.msra.mxu0 0
      %463 = vmatprep.subr.bf16.mxu0 0
      %464 = vmatpush1.bf16.msra.mxu0 0
      %465 = vmatprep.mubr.bf16.mxu0 0
      %466 = vmatmul.mubr.bf16.gmra.mrb[0].mxu0 %v380
      %v467 = vpop.f32.mrb[0].mxu0
      %v468 = vadd.f32 %v376, %v467
      %v469 = vpop.f32.mrb[0].mxu0
      %v470 = vpop.f32.mrb[0].mxu0
      %v471 = vpop.f32.mrb[0].mxu0
      %472 = vdwg.mxu0
      %v473 = vmax.f32 %v427, 0.0
      %v474 = vmax.f32 %v429, 0.0
      %v475 = vmax.f32 %v468, 0.0
      %v477 = vlaneseq
      %v478 = vshrl.u32 %v477, 7
      %v479 = vsub.s32 0, %v478
      %v480 = vrot.slane %v253, %v479
      %v481 = vlaneseq
      %v482 = vshrl.u32 %v481, 7
      %v483 = vsub.s32 1, %v482
      %v484 = vrot.slane %v253, %v483
      %v485 = vlaneseq
      %v486 = vshrl.u32 %v485, 7
      %v487 = vsub.s32 2, %v486
      %v488 = vrot.slane %v253, %v487
      %v492 = vmul.f32 %v473, %v480
      %v493 = vmul.f32 %v474, %v484
      %v494 = vmul.f32 %v475, %v488
      %495 = vst [vmem:[#allocation2] sm:$0xff] 0.0
      %496 = vst [vmem:[#allocation2 + $0x18] sm:$0xff] 0.0
      %497 = vst [vmem:[#allocation2 + $0x8] sm:$0xff] %v492
      %498 = vst [vmem:[#allocation2 + $0x10] sm:$0xff] %v493
      %vm499 = vcmask 261120
      %500 = vst.msk [vmem:[#allocation2 + $0x18] sm:$0xff] %vm499, %v494
      %v501 = vld [vmem:[#allocation2] sm:$0xff]
      %v502 = vld [vmem:[#allocation2 + $0x8] sm:$0xff]
      %v503 = vld [vmem:[#allocation2 + $0x10] sm:$0xff]
      %v504 = vld [vmem:[#allocation2 + $0x18] sm:$0xff]
      %509 = vrot.lane.b32.xlu0 %v501, 127
      %v510 = vpop.permute.xlu0 %509
      %511 = vrot.lane.b32.xlu0 %v502, 127
      %v512 = vpop.permute.xlu0 %511
      %513 = vrot.lane.b32.xlu0 %v503, 127
      %v514 = vpop.permute.xlu0 %513
      %515 = vrot.lane.b32.xlu0 %v504, 127
      %v516 = vpop.permute.xlu0 %515
      %v517 = vsel %vm266, %v510, %v512
      %v518 = vsel %vm266, %v512, %v514
      %v519 = vsel %vm266, %v514, %v516
      %524 = vrot.lane.b32.xlu0 %v501, 126
      %v525 = vpop.permute.xlu0 %524
      %526 = vrot.lane.b32.xlu0 %v502, 126
      %v527 = vpop.permute.xlu0 %526
      %528 = vrot.lane.b32.xlu0 %v503, 126
      %v529 = vpop.permute.xlu0 %528
      %530 = vrot.lane.b32.xlu0 %v504, 126
      %v531 = vpop.permute.xlu0 %530
      %v532 = vsel %vm278, %v525, %v527
      %v533 = vsel %vm278, %v527, %v529
      %v534 = vsel %vm278, %v529, %v531
      %539 = vrot.lane.b32.xlu0 %v501, 110
      %v540 = vpop.permute.xlu0 %539
      %541 = vrot.lane.b32.xlu0 %v502, 110
      %v542 = vpop.permute.xlu0 %541
      %543 = vrot.lane.b32.xlu0 %v503, 110
      %v544 = vpop.permute.xlu0 %543
      %545 = vrot.lane.b32.xlu0 %v504, 110
      %v546 = vpop.permute.xlu0 %545
      %v547 = vsel %vm290, %v540, %v542
      %v548 = vsel %vm290, %v542, %v544
      %v549 = vsel %vm290, %v544, %v546
      %554 = vrot.lane.b32.xlu0 %v502, 109
      %v555 = vpop.permute.xlu0 %554
      %556 = vrot.lane.b32.xlu0 %v503, 109
      %v557 = vpop.permute.xlu0 %556
      %558 = vrot.lane.b32.xlu0 %v504, 109
      %v559 = vpop.permute.xlu0 %558
      %v560 = vsel %vm302, %v555, %v557
      %v561 = vsel %vm302, %v557, %v559
      %566 = vrot.lane.b32.xlu0 %v502, 108
      %v567 = vpop.permute.xlu0 %566
      %568 = vrot.lane.b32.xlu0 %v503, 108
      %v569 = vpop.permute.xlu0 %568
      %570 = vrot.lane.b32.xlu0 %v504, 108
      %v571 = vpop.permute.xlu0 %570
      %v572 = vsel %vm314, %v567, %v569
      %v573 = vsel %vm314, %v569, %v571
      %578 = vrot.lane.b32.xlu0 %v502, 92
      %v579 = vpop.permute.xlu0 %578
      %580 = vrot.lane.b32.xlu0 %v503, 92
      %v581 = vpop.permute.xlu0 %580
      %582 = vrot.lane.b32.xlu0 %v504, 92
      %v583 = vpop.permute.xlu0 %582
      %v584 = vsel %vm326, %v579, %v581
      %v585 = vsel %vm326, %v581, %v583
      %590 = vrot.lane.b32.xlu0 %v502, 91
      %v591 = vpop.permute.xlu0 %590
      %592 = vrot.lane.b32.xlu0 %v503, 91
      %v593 = vpop.permute.xlu0 %592
      %594 = vrot.lane.b32.xlu0 %v504, 91
      %v595 = vpop.permute.xlu0 %594
      %v596 = vsel %vm338, %v591, %v593
      %v597 = vsel %vm338, %v593, %v595
      %602 = vrot.lane.b32.xlu0 %v502, 90
      %v603 = vpop.permute.xlu0 %602
      %604 = vrot.lane.b32.xlu0 %v503, 90
      %v605 = vpop.permute.xlu0 %604
      %606 = vrot.lane.b32.xlu0 %v504, 90
      %v607 = vpop.permute.xlu0 %606
      %v608 = vsel %vm350, %v603, %v605
      %v609 = vsel %vm350, %v605, %v607
      %v614 = vld [vmem:[%s4] sm:$0xf]
      %v615 = vld [vmem:[%s4 + $0x4] sm:$0xf]
      %v616 = vpack.c.bf16 %v517, %v501
      %v617 = vpack.c.bf16 %v518, %v502
      %v618 = vpack.c.bf16 %v519, %v503
      %v619 = vpack.c.bf16 %v516, %v504
      %v620 = vpack.c.bf16 %v547, %v532
      %v621 = vpack.c.bf16 %v548, %v533
      %v622 = vpack.c.bf16 %v549, %v534
      %v623 = vpack.c.bf16 %v546, %v531
      %v624 = vpack.c.bf16 %v567, %v555
      %v625 = vpack.c.bf16 %v572, %v560
      %v626 = vpack.c.bf16 %v573, %v561
      %v627 = vpack.c.bf16 %v571, %v559
      %v628 = vpack.c.bf16 %v591, %v579
      %v629 = vpack.c.bf16 %v596, %v584
      %v630 = vpack.c.bf16 %v597, %v585
      %v631 = vpack.c.bf16 %v595, %v583
      %v632 = vpack.c.bf16 %v603, %v603
      %v633 = vpack.c.bf16 %v608, %v608
      %v634 = vpack.c.bf16 %v609, %v609
      %v635 = vpack.c.bf16 %v607, %v607
      %v636 = vld [vmem:[%s5] sm:$0xff]
      %v637 = vld [vmem:[%s5 + $0x8] sm:$0xff]
      %639 = vset.pattern.permute.xlu0 0
      %640 = vperm.xlu0 %639, %v636
      %v641 = vpop.permute.xlu0 %640
      %644 = vset.pattern.permute.xlu0 0
      %645 = vperm.xlu0 %644, %v637
      %v646 = vpop.permute.xlu0 %645
      %v650 = vunpack.c.l.b16 %v614
      %v651 = vunpack.c.l.b16 %v615
      %v652 = vpack.c.b16 %v651, %v650
      %673 = vrot.lane.b32.xlu0 %v616, 19
      %v674 = vpop.permute.xlu0 %673
      %675 = vrot.lane.b32.xlu0 %v617, 19
      %v676 = vpop.permute.xlu0 %675
      %677 = vrot.lane.b32.xlu0 %v618, 19
      %v678 = vpop.permute.xlu0 %677
      %679 = vrot.lane.b32.xlu0 %v619, 19
      %v680 = vpop.permute.xlu0 %679
      %681 = vrot.lane.b32.xlu0 %v620, 19
      %v682 = vpop.permute.xlu0 %681
      %683 = vrot.lane.b32.xlu0 %v621, 19
      %v684 = vpop.permute.xlu0 %683
      %685 = vrot.lane.b32.xlu0 %v622, 19
      %v686 = vpop.permute.xlu0 %685
      %687 = vrot.lane.b32.xlu0 %v623, 19
      %v688 = vpop.permute.xlu0 %687
      %689 = vrot.lane.b32.xlu0 %v624, 19
      %v690 = vpop.permute.xlu0 %689
      %691 = vrot.lane.b32.xlu0 %v625, 19
      %v692 = vpop.permute.xlu0 %691
      %693 = vrot.lane.b32.xlu0 %v626, 19
      %v694 = vpop.permute.xlu0 %693
      %695 = vrot.lane.b32.xlu0 %v627, 19
      %v696 = vpop.permute.xlu0 %695
      %697 = vrot.lane.b32.xlu0 %v628, 19
      %v698 = vpop.permute.xlu0 %697
      %699 = vrot.lane.b32.xlu0 %v629, 19
      %v700 = vpop.permute.xlu0 %699
      %701 = vrot.lane.b32.xlu0 %v630, 19
      %v702 = vpop.permute.xlu0 %701
      %703 = vrot.lane.b32.xlu0 %v631, 19
      %v704 = vpop.permute.xlu0 %703
      %705 = vrot.lane.b32.xlu0 %v632, 19
      %v706 = vpop.permute.xlu0 %705
      %707 = vrot.lane.b32.xlu0 %v633, 19
      %v708 = vpop.permute.xlu0 %707
      %709 = vrot.lane.b32.xlu0 %v634, 19
      %v710 = vpop.permute.xlu0 %709
      %711 = vrot.lane.b32.xlu0 %v635, 19
      %v712 = vpop.permute.xlu0 %711
      %vm713 = vcmask 154624
      %v714 = vsel %vm713, %v674, %v676
      %v715 = vsel %vm713, %v676, %v678
      %v716 = vsel %vm713, %v678, %v680
      %v717 = vsel %vm713, %v682, %v684
      %v718 = vsel %vm713, %v684, %v686
      %v719 = vsel %vm713, %v686, %v688
      %v720 = vsel %vm713, %v690, %v692
      %v721 = vsel %vm713, %v692, %v694
      %v722 = vsel %vm713, %v694, %v696
      %v723 = vsel %vm713, %v698, %v700
      %v724 = vsel %vm713, %v700, %v702
      %v725 = vsel %vm713, %v702, %v704
      %v726 = vsel %vm713, %v706, %v708
      %v727 = vsel %vm713, %v708, %v710
      %v728 = vsel %vm713, %v710, %v712
      %v742 = vsel %vm378, %v652, 0
      %v745 = vsel %vm382, %v726, 0
      %v748 = vsel %vm382, %v727, 0
      %v751 = vsel %vm382, %v728, 0
      %753 = vmatprep.subr.bf16.mxu0 %v715
      %754 = vmatpush1.bf16.msra.mxu0 %v714
      %755 = vmatprep.subr.bf16.mxu0 %v718
      %756 = vmatpush1.bf16.msra.mxu0 %v717
      %757 = vmatprep.subr.bf16.mxu0 %v721
      %758 = vmatpush1.bf16.msra.mxu0 %v720
      %759 = vmatprep.subr.bf16.mxu0 %v724
      %760 = vmatpush1.bf16.msra.mxu0 %v723
      %761 = vmatprep.subr.bf16.mxu0 %v748
      %762 = vmatpush1.bf16.msra.mxu0 %v745
      %763 = vmatprep.subr.bf16.mxu0 0
      %764 = vmatpush1.bf16.msra.mxu0 0
      %765 = vmatprep.subr.bf16.mxu0 0
      %766 = vmatpush1.bf16.msra.mxu0 0
      %767 = vmatprep.subr.bf16.mxu0 0
      %768 = vmatpush1.bf16.msra.mxu0 0
      %769 = vmatprep.subr.bf16.mxu0 0
      %770 = vmatpush1.bf16.msra.mxu0 0
      %771 = vmatprep.subr.bf16.mxu0 0
      %772 = vmatpush1.bf16.msra.mxu0 0
      %773 = vmatprep.subr.bf16.mxu0 0
      %774 = vmatpush1.bf16.msra.mxu0 0
      %775 = vmatprep.subr.bf16.mxu0 0
      %776 = vmatpush1.bf16.msra.mxu0 0
      %777 = vmatprep.subr.bf16.mxu0 0
      %778 = vmatpush1.bf16.msra.mxu0 0
      %779 = vmatprep.subr.bf16.mxu0 0
      %780 = vmatpush1.bf16.msra.mxu0 0
      %781 = vmatprep.subr.bf16.mxu0 0
      %782 = vmatpush1.bf16.msra.mxu0 0
      %783 = vmatprep.subr.bf16.mxu0 0
      %784 = vmatpush1.bf16.msra.mxu0 0
      %785 = vmatprep.mubr.bf16.mxu0 0
      %786 = vmatmul.mubr.bf16.gmra.mrb[0].mxu0 %v742
      %v787 = vpop.f32.mrb[0].mxu0
      %v788 = vadd.f32 %v641, %v787
      %v789 = vpop.f32.mrb[0].mxu0
      %v790 = vadd.f32 %v641, %v789
      %v791 = vpop.f32.mrb[0].mxu0
      %v792 = vadd.f32 %v646, %v791
      %v793 = vpop.f32.mrb[0].mxu0
      %v794 = vadd.f32 %v646, %v793
      %795 = vdwg.mxu0
      %796 = vmatprep.subr.bf16.mxu0 0
      %797 = vmatpush1.bf16.msra.mxu0 %v716
      %798 = vmatprep.subr.bf16.mxu0 0
      %799 = vmatpush1.bf16.msra.mxu0 %v719
      %800 = vmatprep.subr.bf16.mxu0 0
      %801 = vmatpush1.bf16.msra.mxu0 %v722
      %802 = vmatprep.subr.bf16.mxu0 0
      %803 = vmatpush1.bf16.msra.mxu0 %v725
      %804 = vmatprep.subr.bf16.mxu0 0
      %805 = vmatpush1.bf16.msra.mxu0 %v751
      %806 = vmatprep.subr.bf16.mxu0 0
      %807 = vmatpush1.bf16.msra.mxu0 0
      %808 = vmatprep.subr.bf16.mxu0 0
      %809 = vmatpush1.bf16.msra.mxu0 0
      %810 = vmatprep.subr.bf16.mxu0 0
      %811 = vmatpush1.bf16.msra.mxu0 0
      %812 = vmatprep.subr.bf16.mxu0 0
      %813 = vmatpush1.bf16.msra.mxu0 0
      %814 = vmatprep.subr.bf16.mxu0 0
      %815 = vmatpush1.bf16.msra.mxu0 0
      %816 = vmatprep.subr.bf16.mxu0 0
      %817 = vmatpush1.bf16.msra.mxu0 0
      %818 = vmatprep.subr.bf16.mxu0 0
      %819 = vmatpush1.bf16.msra.mxu0 0
      %820 = vmatprep.subr.bf16.mxu0 0
      %821 = vmatpush1.bf16.msra.mxu0 0
      %822 = vmatprep.subr.bf16.mxu0 0
      %823 = vmatpush1.bf16.msra.mxu0 0
      %824 = vmatprep.subr.bf16.mxu0 0
      %825 = vmatpush1.bf16.msra.mxu0 0
      %826 = vmatprep.subr.bf16.mxu0 0
      %827 = vmatpush1.bf16.msra.mxu0 0
      %828 = vmatprep.mubr.bf16.mxu0 0
      %829 = vmatmul.mubr.bf16.gmra.mrb[0].mxu0 %v742
      %v830 = vpop.f32.mrb[0].mxu0
      %v831 = vadd.f32 %v641, %v830
      %v832 = vpop.f32.mrb[0].mxu0
      %v833 = vpop.f32.mrb[0].mxu0
      %v834 = vadd.f32 %v646, %v833
      %v835 = vpop.f32.mrb[0].mxu0
      %836 = vdwg.mxu0
      %v837 = vmax.f32 %v788, 0.0
      %v838 = vmax.f32 %v790, 0.0
      %v839 = vmax.f32 %v831, 0.0
      %v840 = vmax.f32 %v792, 0.0
      %v841 = vmax.f32 %v794, 0.0
      %v842 = vmax.f32 %v834, 0.0
      %843 = vst [vmem:[%s251] sm:$0xff] %v837
      %844 = vst [vmem:[%s251 + $0x8] sm:$0xff] %v838
      %845 = vst.msk [vmem:[%s251 + $0x10] sm:$0xff] %vm499, %v839
      %846 = vst [vmem:[%s251 + $0x18] sm:$0xff] %v840
      %847 = vst [vmem:[%s251 + $0x20] sm:$0xff] %v841
      %848 = vst.msk [vmem:[%s251 + $0x28] sm:$0xff] %vm499, %v842
      %p849 = scmp.lt.s32.totalorder %s17, 1
      %s850 = scalar_select %p849, %s17, 1
      %s851 = smul.addr %s850, 6
      %s852 = smul.addr %s851, 8
      %s853 = scalar_lea.vmem %s6, %s852
      // Predicated region
      $region45: #{decoder_block_forward.1} parent=43 // pred_check
        %p854 = pneg %p166
      $region46: #{decoder_block_forward.1} parent=43 // pred_check_branch
        %856 = sbr.rel (%p854) target = $region48
      $region47: #{decoder_block_forward.1} parent=43 // pred_region
        _
      $region48: #{decoder_block_forward.1} parent=43 // pred_fallthru
        _
    $region44: #{decoder_block_forward.1} parent=5 // pred_fallthru
      _
    %p857 = scmp.le.s32.totalorder 2, %s12
    // Predicated region
    $region49: #{decoder_block_forward.1} parent=5 // pred_check
      %p858 = pneg %p857
    $region50: #{decoder_block_forward.1} parent=5 // pred_check_branch
      %860 = sbr.rel (%p858) target = $region52
    $region51: #{decoder_block_forward.1} parent=5 // pred_region
      %s861 = ssub.s32 %s12, 2
      // Predicated region
      $region53: #{decoder_block_forward.1} parent=51 // pred_check
        %p862 = pneg %p172
      $region54: #{decoder_block_forward.1} parent=51 // pred_check_branch
        %864 = sbr.rel (%p862) target = $region56
      $region55: #{decoder_block_forward.1} parent=51 // pred_region
        %p865 = scmp.lt.s32.totalorder %s18, 1
        %s866 = scalar_select %p865, %s18, 1
        %s867 = smul.addr %s866, 6
        %s868 = smul.addr %s867, 8
        %s869 = scalar_lea.vmem %s6, %s868
      $region56: #{decoder_block_forward.1} parent=51 // pred_fallthru
        _
    $region52: #{decoder_block_forward.1} parent=5 // pred_fallthru
      _
  $region6: #{decoder_block_forward.1} parent=0 // loop_footer
    %s16 = sadd.s32 1, %s12
  $region7: #{decoder_block_forward.1} parent=0 // loop_footer_branch
    %11 = sbr.rel target = $region3
  $region8: #{decoder_block_forward.1} parent=0 // loop_exit
    _

</llo_original>
